<compile_context>
chip_gen: v6e
topology: v6e:2x2x1
jax: 0.10.0
libtpu: 0.0.40
codegen_flags: <defaults>
</compile_context>

<pallas_src>
import jax
import jax.numpy as jnp
from jax.experimental import pallas as pl
from jax.experimental.pallas import tpu as pltpu

P_DROP = 0.5          # module spec: Dropout(p=0.5), training mode
_KEEP_THRESH = 128    # uint8 bits >= 128  <=>  keep prob exactly 0.5 (Python int)

_LANES = 128
_SUBLANES = 8
_VREG_ELEMS = _LANES * _SUBLANES   # 1024 elements
_MAX_COLS = 2048                   # lane-dense block width cap
_TILE_ROWS = 256                   # row tile for batched reuse (double-buffered fits scoped VMEM)


def relu_dropout_kernel(x_ref, bits_ref, o_ref):
    """Fused ReLU + inverted dropout (p=0.5) on the VPU.

    All constants are Python scalars -> jaxpr literals (no captured device
    constants).  bits are uint8 (4x less HBM traffic than uint32).
    """
    x = x_ref[...].astype(jnp.float32)            # f32 math (v5e has no bf16 VALU)
    r = jnp.maximum(x, 0.0)                       # ReLU
    keep = bits_ref[...].astype(jnp.int32) >= _KEEP_THRESH   # Bernoulli(0.5) keep mask
    # scale = 1/(1-0.5) = 2.0 folded into (r + r): one add + one select
    o_ref[...] = jnp.where(keep, r + r, 0.0).astype(o_ref.dtype)


def _dense_shape(n: int):
    """Pick (rows, cols, pad): rows % 8 == 0, cols % 128 == 0, rows*cols == n+pad."""
    if n % _VREG_ELEMS == 0:
        cols = n // _SUBLANES
        while cols > _MAX_COLS and cols % (2 * _LANES) == 0:
            cols //= 2
        return n // cols, cols, 0
    padded = pl.cdiv(n, _VREG_ELEMS) * _VREG_ELEMS
    return padded // _LANES, _LANES, padded - n


@jax.jit
def relu_dropout(x, key):
    """ReLU + Dropout(p=0.5, training=True), matching M.forward(x34)."""
    # TODO(synk): if x34 is produced by an upstream Linear/matmul, fuse this body
    # into that kernel's epilogue (on the accumulator tile before the final store)
    # to remove the extra HBM round trip and kernel launch.
    # TODO(synk): on a real-TPU-only path, generate the bits on-chip with
    # pltpu.prng_seed + pltpu.prng_random_bits (scalar seed in SMEM) and drop the
    # bits input entirely; kept host-side here so interpret-mode checking works.
    orig_shape, orig_dtype = x.shape, x.dtype
    n = x.size
    rows, cols, pad = _dense_shape(n)

    xf = x.reshape(-1)
    if pad:
        xf = jnp.pad(xf, (0, pad))
    x2 = xf.reshape(rows, cols)

    # uint8 random words: 4x less HBM traffic than uint32 for the mask stream.
    bits = jax.random.bits(key, (rows, cols), dtype=jnp.uint8)

    tb = min(_TILE_ROWS, rows)
    rem = rows % tb
    if rem:
        extra = tb - rem
        x2 = jnp.pad(x2, ((0, extra), (0, 0)))
        bits = jnp.pad(bits, ((0, extra), (0, 0)))
        rows += extra
    grid = (rows // tb,)

    out = pl.pallas_call(
        relu_dropout_kernel,
        out_shape=jax.ShapeDtypeStruct((rows, cols), orig_dtype),
        grid=grid,
        in_specs=[
            pl.BlockSpec((tb, cols), lambda i: (i, 0)),   # activations
            pl.BlockSpec((tb, cols), lambda i: (i, 0)),   # uint8 random bits
        ],
        out_specs=pl.BlockSpec((tb, cols), lambda i: (i, 0)),
        # x34 is a dead intermediate after dropout -> reuse its HBM buffer.
        input_output_aliases={0: 0},
        compiler_params=pltpu.CompilerParams(
            dimension_semantics=("parallel",)),
    )(x2, bits)

    out = out.reshape(-1)
    if out.size != n:
        out = out[:n]
    return out.reshape(orig_shape)


if __name__ == "__main__":
    root = jax.random.PRNGKey(0)
    k_x, k_drop = jax.random.split(root)

    # Matches the module's input: torch.randn([1, 4096])
    x = jax.random.normal(k_x, (1, 4096), dtype=jnp.float32)

    out = jax.block_until_ready(relu_dropout(x, k_drop))

    # Exact reference using the same random words the wrapper draws.
    rows, cols, pad = _dense_shape(x.size)
    bits_ref = jax.random.bits(k_drop, (rows, cols), dtype=jnp.uint8)
    keep_ref = (bits_ref >= _KEEP_THRESH).reshape(-1)[: x.size].reshape(x.shape)
    expected = jnp.where(keep_ref, 2.0 * jnp.maximum(x, 0.0), 0.0)

    assert out.shape == x.shape
    assert out.dtype == x.dtype
    assert bool(jnp.all(out >= 0.0))                      # ReLU => no negatives
    assert bool(jnp.allclose(out, expected, atol=1e-6))   # inverted-dropout semantics

    print("KERNEL_OK")
</pallas_src>

<mosaic_0001>
module attributes {stable_mosaic.version = 11 : i64} {
  func.func @relu_dropout_kernel(%arg0: i32, %arg1: memref<8x512xf32, #tpu.memory_space<vmem>>, %arg2: memref<8x512xi8, #tpu.memory_space<vmem>>, %arg3: memref<8x512xf32, #tpu.memory_space<vmem>>) attributes {dimension_semantics = [#tpu.dimension_semantics<parallel>], iteration_bounds = array<i64: 1>, scalar_prefetch = 0 : i64, scratch_operands = 0 : i64, tpu.core_type = #tpu.core_type<tc>, window_params = [{transform_indices = @transform_0, window_bounds = array<i64: 8, 512>}, {transform_indices = @transform_1, window_bounds = array<i64: 8, 512>}, {transform_indices = @transform_2, window_bounds = array<i64: 8, 512>}]} {
    %c0 = arith.constant 0 : index
    %c0_0 = arith.constant 0 : index
    %0 = vector.load %arg1[%c0, %c0_0] : memref<8x512xf32, #tpu.memory_space<vmem>>, vector<8x512xf32>
    %cst = arith.constant 0.000000e+00 : f32
    %1 = vector.broadcast %cst : f32 to vector<8x512xf32>
    %2 = arith.maximumf %0, %1 : vector<8x512xf32>
    %c0_1 = arith.constant 0 : index
    %c0_2 = arith.constant 0 : index
    %3 = vector.load %arg2[%c0_1, %c0_2] : memref<8x512xi8, #tpu.memory_space<vmem>>, vector<8x512xi8>
    %4 = arith.extui %3 : vector<8x512xi8> to vector<8x512xi32>
    %c128_i32 = arith.constant 128 : i32
    %5 = vector.broadcast %c128_i32 : i32 to vector<8x512xi32>
    %6 = arith.cmpi sge, %4, %5 : vector<8x512xi32>
    %7 = arith.addf %2, %2 : vector<8x512xf32>
    %cst_3 = arith.constant 0.000000e+00 : f32
    %8 = vector.broadcast %cst_3 : f32 to vector<8x512xf32>
    %9 = arith.select %6, %7, %8 : vector<8x512xi1>, vector<8x512xf32>
    %c0_4 = arith.constant 0 : index
    %c0_5 = arith.constant 0 : index
    %10 = vector.load %arg3[%c0_4, %c0_5] : memref<8x512xf32, #tpu.memory_space<vmem>>, vector<8x512xf32>
    tpu.vector_store %arg3[%c0_4, %c0_5], %9 {strides = array<i32>} : memref<8x512xf32, #tpu.memory_space<vmem>>, vector<8x512xf32>,
    return
  }
  func.func @transform_0(%arg0: i32) -> (i32, i32) {
    %c0_i32 = arith.constant 0 : i32
    %c0_i32_0 = arith.constant 0 : i32
    return %arg0, %c0_i32 : i32, i32
  }
  func.func @transform_1(%arg0: i32) -> (i32, i32) {
    %c0_i32 = arith.constant 0 : i32
    %c0_i32_0 = arith.constant 0 : i32
    return %arg0, %c0_i32 : i32, i32
  }
  func.func @transform_2(%arg0: i32) -> (i32, i32) {
    %c0_i32 = arith.constant 0 : i32
    %c0_i32_0 = arith.constant 0 : i32
    return %arg0, %c0_i32 : i32, i32
  }
}

</mosaic_0001>

<llo_original>
// kernel: relu_dropout.1
$region0: #{relu_dropout.1}
  #allocation0 [shape = 'u32[]', space=smem, size = 0x4, offset = 0x4, fixed_abs, tag = 'smem constant byte address 0x4 - core index']
  #allocation1 [shape = 'u32[144,128]{1,0:T(1,128)}', space=vmem, size = 0x12000, scoped, tag = 'internal scratch']
  %s0 = inlined_call_operand.vmem [shape: f32[8,512], index: 0, kind: input, shape index: {}, may-alias: {0,2}]
  %s1 = inlined_call_operand.vmem [shape: u8[8,512], index: 1, kind: input, shape index: {}]
  %s2 = inlined_call_operand.vmem [shape: f32[8,512], index: 2, kind: output, shape index: {}, may-alias: {0,2}]
  %s3 = sld [smem:[#allocation0]]
  $region18: #{relu_dropout.1} parent=0
    _
  %s5 = ssub.s32 1, %s3
  %s6 = scalar_select 0, %s5, %s3
  // Predicated region
  $region2: #{relu_dropout.1} parent=0 // pred_check
    _
  $region3: #{relu_dropout.1} parent=0 // pred_check_branch
    %8 = sbr.rel (0) target = $region5
  $region4: #{relu_dropout.1} parent=0 // pred_region
    _
  $region5: #{relu_dropout.1} parent=0 // pred_fallthru
    _
  // Predicated region
  $region6: #{relu_dropout.1} parent=0 // pred_check
    _
  $region7: #{relu_dropout.1} parent=0 // pred_check_branch
    %10 = sbr.rel (0) target = $region9
  $region8: #{relu_dropout.1} parent=0 // pred_region
    _
  $region9: #{relu_dropout.1} parent=0 // pred_fallthru
    _
  %v11 = vld [vmem:[%s0] sm:$0xff]
  %v12 = vld [vmem:[%s0 + $0x8] sm:$0xff]
  %v13 = vld [vmem:[%s0 + $0x10] sm:$0xff]
  %v14 = vld [vmem:[%s0 + $0x18] sm:$0xff]
  %v15 = vmax.f32 %v11, 0.0
  %v16 = vmax.f32 %v12, 0.0
  %v17 = vmax.f32 %v13, 0.0
  %v18 = vmax.f32 %v14, 0.0
  %v19 = vld [vmem:[%s1] sm:$0xff]
  %v20 = vunpack.c.0.s8 %v19
  %v21 = vunpack.c.1.s8 %v19
  %v22 = vunpack.c.2.s8 %v19
  %v23 = vunpack.c.3.s8 %v19
  %v24 = vand.u32 %v20, 255
  %v25 = vand.u32 %v21, 255
  %v26 = vand.u32 %v22, 255
  %v27 = vand.u32 %v23, 255
  %vm28 = vcmp.ge.s32.totalorder %v24, 128
  %vm29 = vcmp.ge.s32.totalorder %v25, 128
  %vm30 = vcmp.ge.s32.totalorder %v26, 128
  %vm31 = vcmp.ge.s32.totalorder %v27, 128
  %v32 = vadd.f32 %v15, %v15
  %v33 = vadd.f32 %v16, %v16
  %v34 = vadd.f32 %v17, %v17
  %v35 = vadd.f32 %v18, %v18
  %v36 = vsel %vm28, %v32, 0.0
  %v37 = vsel %vm29, %v33, 0.0
  %v38 = vsel %vm30, %v34, 0.0
  %v39 = vsel %vm31, %v35, 0.0
  %40 = vst [vmem:[%s2] sm:$0xff] %v36
  %41 = vst [vmem:[%s2 + $0x8] sm:$0xff] %v37
  %42 = vst [vmem:[%s2 + $0x10] sm:$0xff] %v38
  %43 = vst [vmem:[%s2 + $0x18] sm:$0xff] %v39
  // Predicated region
  $region10: #{relu_dropout.1} parent=0 // pred_check
    _
  $region11: #{relu_dropout.1} parent=0 // pred_check_branch
    %45 = sbr.rel (0) target = $region13
  $region12: #{relu_dropout.1} parent=0 // pred_region
    _
  $region13: #{relu_dropout.1} parent=0 // pred_fallthru
    _
  // Predicated region
  $region14: #{relu_dropout.1} parent=0 // pred_check
    _
  $region15: #{relu_dropout.1} parent=0 // pred_check_branch
    %47 = sbr.rel (0) target = $region17
  $region16: #{relu_dropout.1} parent=0 // pred_region
    _
  $region17: #{relu_dropout.1} parent=0 // pred_fallthru
    _

</llo_original>
